<compile_context>
chip_gen: v5e
topology: v5e:2x2
jax: 0.10.0
libtpu: 0.0.40
codegen_flags: <defaults>
</compile_context>

<pallas_src>
import math

import jax
import jax.numpy as jnp
from jax.experimental import pallas as pl
from jax.experimental.pallas import tpu as pltpu


def _layer_norm(v, eps=1e-5):
    mu = jnp.mean(v, axis=-1, keepdims=True)
    var = jnp.mean((v - mu) ** 2, axis=-1, keepdims=True)
    return (v - mu) * jax.lax.rsqrt(var + eps)


def encoder_layer_kernel(x_ref, w1_ref, b1_ref, w2_ref, b2_ref, o_ref):
    # One batch block per grid step.
    x = x_ref[...].astype(jnp.float32)            # (Bblk, N, D)
    bblk, n, d = x.shape
    inv_scale = 1.0 / math.sqrt(float(d))

    # --- sublayer 0: pre-LN self-attention (no projections) + residual ---
    h = _layer_norm(x)                            # (Bblk, N, D)
    # Batched QK^T: contraction on the last axis of both operands -> no explicit h.T.
    scores = jnp.einsum("bnd,bmd->bnm", h, h,
                        preferred_element_type=jnp.float32) * inv_scale  # (Bblk, N, N)
    m = jnp.max(scores, axis=-1, keepdims=True)
    e = jnp.exp(scores - m)
    denom = jnp.sum(e, axis=-1, keepdims=True)
    r = pl.reciprocal(denom, approx=True)         # EUP vrcp estimate (otherwise-idle slot)
    r = r * (2.0 - denom * r)                     # one Newton step -> ~full f32 accuracy
    prob = e * r
    x = x + jnp.einsum("bnm,bmd->bnd", prob, h,
                       preferred_element_type=jnp.float32)

    # --- sublayer 1: pre-LN FFN + residual (flattened -> one matmul per layer) ---
    h2 = _layer_norm(x).reshape(bblk * n, d)      # (Bblk*N, D)
    hidden = jnp.dot(h2, w1_ref[...], preferred_element_type=jnp.float32) + b1_ref[...]
    hidden = jnp.maximum(hidden, 0.0)
    y = jnp.dot(hidden, w2_ref[...], preferred_element_type=jnp.float32) + b2_ref[...]
    x = x + y.reshape(bblk, n, d)

    o_ref[...] = x.astype(o_ref.dtype)


def inr_encoder_layer(x, w1, b1, w2, b2, *, num_blocks=None):
    """x: [B, N, D]; w1: [D, H]; b1: [1, H]; w2: [H, D]; b2: [1, D]."""
    B, N, D = x.shape
    H = w1.shape[1]
    if num_blocks is None:
        # Keep >= 2 parallel grid points when possible (v7x has 2 TensorCores);
        # otherwise a single step over the whole batch amortizes per-step overhead.
        num_blocks = 2 if (B >= 2 and B % 2 == 0) else 1
    assert B % num_blocks == 0, "batch must divide evenly over grid blocks"
    bblk = B // num_blocks

    # NOTE: weight/bias BlockSpecs are constant across the grid; the default
    # double-buffering overhead is negligible at D=32/H=64 (single-buffering them
    # only pays off once D/H scale up against v7x's 64 MiB VMEM).
    return pl.pallas_call(
        encoder_layer_kernel,
        out_shape=jax.ShapeDtypeStruct((B, N, D), x.dtype),
        grid_spec=pltpu.PrefetchScalarGridSpec(
            num_scalar_prefetch=0,
            grid=(num_blocks,),
            in_specs=[
                pl.BlockSpec((bblk, N, D), lambda b: (b, 0, 0)),
                pl.BlockSpec((D, H), lambda b: (0, 0)),
                pl.BlockSpec((1, H), lambda b: (0, 0)),
                pl.BlockSpec((H, D), lambda b: (0, 0)),
                pl.BlockSpec((1, D), lambda b: (0, 0)),
            ],
            out_specs=pl.BlockSpec((bblk, N, D), lambda b: (b, 0, 0)),
        ),
        compiler_params=pltpu.CompilerParams(
            dimension_semantics=("parallel",)
        ),
    )(x, w1, b1, w2, b2)


if __name__ == "__main__":
    # Small shapes consistent with the module: features=32, exp_factor=2, seq=8, batch=2.
    B, N, D, EXP = 2, 8, 32, 2
    H = EXP * D

    key = jax.random.PRNGKey(0)
    kx, k1, kb1, k2, kb2 = jax.random.split(key, 5)

    x = jax.random.normal(kx, (B, N, D), dtype=jnp.float32)

    # Deterministic parameter init (PyTorch Linear-like uniform bounds).
    bound1 = 1.0 / math.sqrt(D)
    bound2 = 1.0 / math.sqrt(H)
    w1 = jax.random.uniform(k1, (D, H), minval=-bound1, maxval=bound1, dtype=jnp.float32)
    b1 = jax.random.uniform(kb1, (1, H), minval=-bound1, maxval=bound1, dtype=jnp.float32)
    w2 = jax.random.uniform(k2, (H, D), minval=-bound2, maxval=bound2, dtype=jnp.float32)
    b2 = jax.random.uniform(kb2, (1, D), minval=-bound2, maxval=bound2, dtype=jnp.float32)

    out = inr_encoder_layer(x, w1, b1, w2, b2)
    jax.block_until_ready(out)

    # Pure-JAX reference check.
    def ref(x):
        h = (x - x.mean(-1, keepdims=True)) / jnp.sqrt(x.var(-1, keepdims=True) + 1e-5)
        s = jnp.einsum("bnd,bmd->bnm", h, h) / math.sqrt(D)
        p = jax.nn.softmax(s, axis=-1)
        x = x + jnp.einsum("bnm,bmd->bnd", p, h)
        h2 = (x - x.mean(-1, keepdims=True)) / jnp.sqrt(x.var(-1, keepdims=True) + 1e-5)
        y = jnp.maximum(h2 @ w1 + b1, 0.0) @ w2 + b2
        return x + y

    assert jnp.allclose(out, ref(x), atol=1e-4, rtol=1e-4), "mismatch vs reference"
    print("KERNEL_OK")
</pallas_src>

<mosaic_0001>
module attributes {stable_mosaic.version = 11 : i64} {
  func.func @encoder_layer_kernel(%arg0: i32, %arg1: memref<1x8x32xf32, #tpu.memory_space<vmem>>, %arg2: memref<32x64xf32, #tpu.memory_space<vmem>>, %arg3: memref<1x64xf32, #tpu.memory_space<vmem>>, %arg4: memref<64x32xf32, #tpu.memory_space<vmem>>, %arg5: memref<1x32xf32, #tpu.memory_space<vmem>>, %arg6: memref<1x8x32xf32, #tpu.memory_space<vmem>>) attributes {dimension_semantics = [#tpu.dimension_semantics<parallel>], iteration_bounds = array<i64: 2>, scalar_prefetch = 0 : i64, scratch_operands = 0 : i64, tpu.core_type = #tpu.core_type<tc>, window_params = [{transform_indices = @transform_0, window_bounds = array<i64: 1, 8, 32>}, {pipeline_mode = #tpu.pipeline_mode<synchronous>, transform_indices = @transform_1, window_bounds = array<i64: 32, 64>}, {pipeline_mode = #tpu.pipeline_mode<synchronous>, transform_indices = @transform_2, window_bounds = array<i64: 1, 64>}, {pipeline_mode = #tpu.pipeline_mode<synchronous>, transform_indices = @transform_3, window_bounds = array<i64: 64, 32>}, {pipeline_mode = #tpu.pipeline_mode<synchronous>, transform_indices = @transform_4, window_bounds = array<i64: 1, 32>}, {transform_indices = @transform_5, window_bounds = array<i64: 1, 8, 32>}]} {
    %c0 = arith.constant 0 : index
    %c0_0 = arith.constant 0 : index
    %c0_1 = arith.constant 0 : index
    %0 = vector.load %arg1[%c0, %c0_0, %c0_1] : memref<1x8x32xf32, #tpu.memory_space<vmem>>, vector<1x8x32xf32>
    %cst = arith.constant dense<0.000000e+00> : vector<1x8xf32>
    %1 = vector.multi_reduction <add>, %0, %cst [2] : vector<1x8x32xf32> to vector<1x8xf32>
    %2 = vector.shape_cast %1 : vector<1x8xf32> to vector<1x8x1xf32>
    %cst_2 = arith.constant 3.200000e+01 : f32
    %3 = vector.broadcast %cst_2 : f32 to vector<1x8x1xf32>
    %4 = arith.divf %2, %3 : vector<1x8x1xf32>
    %5 = vector.broadcast %4 : vector<1x8x1xf32> to vector<1x8x32xf32>
    %6 = arith.subf %0, %5 : vector<1x8x32xf32>
    %7 = arith.mulf %6, %6 : vector<1x8x32xf32>
    %cst_3 = arith.constant dense<0.000000e+00> : vector<1x8xf32>
    %8 = vector.multi_reduction <add>, %7, %cst_3 [2] : vector<1x8x32xf32> to vector<1x8xf32>
    %9 = vector.shape_cast %8 : vector<1x8xf32> to vector<1x8x1xf32>
    %cst_4 = arith.constant 3.200000e+01 : f32
    %10 = vector.broadcast %cst_4 : f32 to vector<1x8x1xf32>
    %11 = arith.divf %9, %10 : vector<1x8x1xf32>
    %12 = vector.broadcast %4 : vector<1x8x1xf32> to vector<1x8x32xf32>
    %13 = arith.subf %0, %12 : vector<1x8x32xf32>
    %cst_5 = arith.constant 9.99999974E-6 : f32
    %14 = vector.broadcast %cst_5 : f32 to vector<1x8x1xf32>
    %15 = arith.addf %11, %14 : vector<1x8x1xf32>
    %16 = math.rsqrt %15 : vector<1x8x1xf32>
    %17 = vector.broadcast %16 : vector<1x8x1xf32> to vector<1x8x32xf32>
    %18 = arith.mulf %13, %17 : vector<1x8x32xf32>
    "tpu.trace_start"() <{level = 10 : i32, message = "bnd,bmd->bnm"}> : () -> ()
    %cst_6 = arith.constant dense<0.000000e+00> : vector<1x8x8xf32>
    %19 = tpu.matmul %18, %18, %cst_6 {dimension_numbers = #tpu.dot_dimension_numbers<[2], [2], [1], [1], [0, 0, 0, 1, 1, 1], [0], [0]>} : vector<1x8x32xf32>, vector<1x8x32xf32>, vector<1x8x8xf32> -> vector<1x8x8xf32>
    "tpu.trace_stop"() : () -> ()
    %cst_7 = arith.constant 0.176776692 : f32
    %20 = vector.broadcast %cst_7 : f32 to vector<1x8x8xf32>
    %21 = arith.mulf %19, %20 : vector<1x8x8xf32>
    %cst_8 = arith.constant dense<0xFF800000> : vector<1x8xf32>
    %22 = vector.multi_reduction <maximumf>, %21, %cst_8 [2] : vector<1x8x8xf32> to vector<1x8xf32>
    %23 = vector.shape_cast %22 : vector<1x8xf32> to vector<1x8x1xf32>
    %24 = vector.broadcast %23 : vector<1x8x1xf32> to vector<1x8x8xf32>
    %25 = arith.subf %21, %24 : vector<1x8x8xf32>
    %26 = math.exp %25 : vector<1x8x8xf32>
    %cst_9 = arith.constant dense<0.000000e+00> : vector<1x8xf32>
    %27 = vector.multi_reduction <add>, %26, %cst_9 [2] : vector<1x8x8xf32> to vector<1x8xf32>
    %28 = vector.shape_cast %27 : vector<1x8xf32> to vector<1x8x1xf32>
    %29 = tpu.reciprocal %28 {approx = true} : vector<1x8x1xf32> -> vector<1x8x1xf32>
    %30 = arith.mulf %28, %29 : vector<1x8x1xf32>
    %cst_10 = arith.constant 2.000000e+00 : f32
    %31 = vector.broadcast %cst_10 : f32 to vector<1x8x1xf32>
    %32 = arith.subf %31, %30 : vector<1x8x1xf32>
    %33 = arith.mulf %29, %32 : vector<1x8x1xf32>
    %34 = vector.broadcast %33 : vector<1x8x1xf32> to vector<1x8x8xf32>
    %35 = arith.mulf %26, %34 : vector<1x8x8xf32>
    "tpu.trace_start"() <{level = 10 : i32, message = "bnm,bmd->bnd"}> : () -> ()
    %cst_11 = arith.constant dense<0.000000e+00> : vector<1x8x32xf32>
    %36 = tpu.matmul %35, %18, %cst_11 {dimension_numbers = #tpu.dot_dimension_numbers<[2], [1], [1], [2], [0, 0, 0, 1, 1, 2], [0], [0]>} : vector<1x8x8xf32>, vector<1x8x32xf32>, vector<1x8x32xf32> -> vector<1x8x32xf32>
    "tpu.trace_stop"() : () -> ()
    %37 = arith.addf %0, %36 : vector<1x8x32xf32>
    %cst_12 = arith.constant dense<0.000000e+00> : vector<1x8xf32>
    %38 = vector.multi_reduction <add>, %37, %cst_12 [2] : vector<1x8x32xf32> to vector<1x8xf32>
    %39 = vector.shape_cast %38 : vector<1x8xf32> to vector<1x8x1xf32>
    %cst_13 = arith.constant 3.200000e+01 : f32
    %40 = vector.broadcast %cst_13 : f32 to vector<1x8x1xf32>
    %41 = arith.divf %39, %40 : vector<1x8x1xf32>
    %42 = vector.broadcast %41 : vector<1x8x1xf32> to vector<1x8x32xf32>
    %43 = arith.subf %37, %42 : vector<1x8x32xf32>
    %44 = arith.mulf %43, %43 : vector<1x8x32xf32>
    %cst_14 = arith.constant dense<0.000000e+00> : vector<1x8xf32>
    %45 = vector.multi_reduction <add>, %44, %cst_14 [2] : vector<1x8x32xf32> to vector<1x8xf32>
    %46 = vector.shape_cast %45 : vector<1x8xf32> to vector<1x8x1xf32>
    %cst_15 = arith.constant 3.200000e+01 : f32
    %47 = vector.broadcast %cst_15 : f32 to vector<1x8x1xf32>
    %48 = arith.divf %46, %47 : vector<1x8x1xf32>
    %49 = vector.broadcast %41 : vector<1x8x1xf32> to vector<1x8x32xf32>
    %50 = arith.subf %37, %49 : vector<1x8x32xf32>
    %cst_16 = arith.constant 9.99999974E-6 : f32
    %51 = vector.broadcast %cst_16 : f32 to vector<1x8x1xf32>
    %52 = arith.addf %48, %51 : vector<1x8x1xf32>
    %53 = math.rsqrt %52 : vector<1x8x1xf32>
    %54 = vector.broadcast %53 : vector<1x8x1xf32> to vector<1x8x32xf32>
    %55 = arith.mulf %50, %54 : vector<1x8x32xf32>
    %56 = vector.shape_cast %55 : vector<1x8x32xf32> to vector<8x32xf32>
    %c0_17 = arith.constant 0 : index
    %c0_18 = arith.constant 0 : index
    %57 = vector.load %arg2[%c0_17, %c0_18] : memref<32x64xf32, #tpu.memory_space<vmem>>, vector<32x64xf32>
    %cst_19 = arith.constant dense<0.000000e+00> : vector<8x64xf32>
    %58 = tpu.matmul %56, %57, %cst_19 {dimension_numbers = #tpu.dot_dimension_numbers<[1], [0], [0], [1], [0, 0, 1, 1], [], []>} : vector<8x32xf32>, vector<32x64xf32>, vector<8x64xf32> -> vector<8x64xf32>
    %c0_20 = arith.constant 0 : index
    %c0_21 = arith.constant 0 : index
    %59 = vector.load %arg3[%c0_20, %c0_21] : memref<1x64xf32, #tpu.memory_space<vmem>>, vector<1x64xf32>
    %60 = vector.broadcast %59 : vector<1x64xf32> to vector<8x64xf32>
    %61 = arith.addf %58, %60 : vector<8x64xf32>
    %cst_22 = arith.constant 0.000000e+00 : f32
    %62 = vector.broadcast %cst_22 : f32 to vector<8x64xf32>
    %63 = arith.maximumf %61, %62 : vector<8x64xf32>
    %c0_23 = arith.constant 0 : index
    %c0_24 = arith.constant 0 : index
    %64 = vector.load %arg4[%c0_23, %c0_24] : memref<64x32xf32, #tpu.memory_space<vmem>>, vector<64x32xf32>
    %cst_25 = arith.constant dense<0.000000e+00> : vector<8x32xf32>
    %65 = tpu.matmul %63, %64, %cst_25 {dimension_numbers = #tpu.dot_dimension_numbers<[1], [0], [0], [1], [0, 0, 1, 1], [], []>} : vector<8x64xf32>, vector<64x32xf32>, vector<8x32xf32> -> vector<8x32xf32>
    %c0_26 = arith.constant 0 : index
    %c0_27 = arith.constant 0 : index
    %66 = vector.load %arg5[%c0_26, %c0_27] : memref<1x32xf32, #tpu.memory_space<vmem>>, vector<1x32xf32>
    %67 = vector.broadcast %66 : vector<1x32xf32> to vector<8x32xf32>
    %68 = arith.addf %65, %67 : vector<8x32xf32>
    %69 = vector.shape_cast %68 : vector<8x32xf32> to vector<1x8x32xf32>
    %70 = arith.addf %37, %69 : vector<1x8x32xf32>
    %c0_28 = arith.constant 0 : index
    %c0_29 = arith.constant 0 : index
    %c0_30 = arith.constant 0 : index
    %71 = vector.load %arg6[%c0_28, %c0_29, %c0_30] : memref<1x8x32xf32, #tpu.memory_space<vmem>>, vector<1x8x32xf32>
    tpu.vector_store %arg6[%c0_28, %c0_29, %c0_30], %70 {strides = array<i32>} : memref<1x8x32xf32, #tpu.memory_space<vmem>>, vector<1x8x32xf32>,
    return
  }
  func.func @transform_0(%arg0: i32) -> (i32, i32, i32) {
    %c0_i32 = arith.constant 0 : i32
    %c0_i32_0 = arith.constant 0 : i32
    %c0_i32_1 = arith.constant 0 : i32
    return %arg0, %c0_i32, %c0_i32_0 : i32, i32, i32
  }
  func.func @transform_1(%arg0: i32) -> (i32, i32) {
    %c0_i32 = arith.constant 0 : i32
    %c0_i32_0 = arith.constant 0 : i32
    %c0_i32_1 = arith.constant 0 : i32
    return %c0_i32, %c0_i32_0 : i32, i32
  }
  func.func @transform_2(%arg0: i32) -> (i32, i32) {
    %c0_i32 = arith.constant 0 : i32
    %c0_i32_0 = arith.constant 0 : i32
    %c0_i32_1 = arith.constant 0 : i32
    return %c0_i32, %c0_i32_0 : i32, i32
  }
  func.func @transform_3(%arg0: i32) -> (i32, i32) {
    %c0_i32 = arith.constant 0 : i32
    %c0_i32_0 = arith.constant 0 : i32
    %c0_i32_1 = arith.constant 0 : i32
    return %c0_i32, %c0_i32_0 : i32, i32
  }
  func.func @transform_4(%arg0: i32) -> (i32, i32) {
    %c0_i32 = arith.constant 0 : i32
    %c0_i32_0 = arith.constant 0 : i32
    %c0_i32_1 = arith.constant 0 : i32
    return %c0_i32, %c0_i32_0 : i32, i32
  }
  func.func @transform_5(%arg0: i32) -> (i32, i32, i32) {
    %c0_i32 = arith.constant 0 : i32
    %c0_i32_0 = arith.constant 0 : i32
    %c0_i32_1 = arith.constant 0 : i32
    return %arg0, %c0_i32, %c0_i32_0 : i32, i32, i32
  }
}

</mosaic_0001>

<llo_original>
// kernel: tpu_custom_call.1
$region0: #{tpu_custom_call.1}
  #allocation0 [shape = 'u32[]', space=smem, size = 0x4, offset = 0x4, fixed_abs, tag = 'smem constant byte address 0x4 - core index']
  #allocation1 [shape = 'u32[72,128]{1,0:T(1,128)}', space=vmem, size = 0x9000, scoped, tag = 'internal scratch']
  %s0 = inlined_call_operand.vmem [shape: f32[2,8,32], index: 0, kind: input, shape index: {}]
  %s1 = inlined_call_operand.vmem [shape: f32[32,64], index: 1, kind: input, shape index: {}]
  %s2 = inlined_call_operand.vmem [shape: f32[1,64], index: 2, kind: input, shape index: {}]
  %s3 = inlined_call_operand.vmem [shape: f32[64,32], index: 3, kind: input, shape index: {}]
  %s4 = inlined_call_operand.vmem [shape: f32[1,32], index: 4, kind: input, shape index: {}]
  %s5 = inlined_call_operand.hbm [shape: f32[2,8,32], index: 5, kind: output, shape index: {}]
  %s6 = sld [smem:[#allocation0]]
  $region53: #{tpu_custom_call.1} parent=0
    _
  %s8 = ssub.s32 1, %s6
  %s9 = scalar_select 0, %s8, %s6
  $region1: #{tpu_custom_call.1} parent=0
    #allocation2 [shape = 'u8[8192]{0}', space=vmem, size = 0x2000, scoped, tag = 'output window, operand 0']
    #allocation3 [shape = 's32[2]{0}', space=sflag, size = 0x8, scoped, tag = 'scoped memory for tpu_custom_call.1']
    %10 = vsyncpa [#allocation3], 0
    %s11 = scalar_lea.sflag [#allocation3], 1
    %12 = vsyncpa %s11, 0
    loop: start=0, step=1, limit=4
    $region2: #{tpu_custom_call.1} parent=1 // loop_pre_header
      _
    $region3: #{tpu_custom_call.1} parent=1 // loop_header
      %s14 = sphi 0, %s18
      %p15 = scmp.ge.s32.totalorder %s14, 4
      %s24 = sphi 0, %s26
      %s27 = sphi 0, %s24
      %s28 = sphi 0, %s27
      %s44 = sphi 0, %s28
      %s48 = sphi 0, %s48
      %s50 = sphi 0, %s48
      %s51 = sphi 0, %s50
      %s65 = sphi 0, %s51
      %s69 = sphi 0, %s69
      %s71 = sphi 0, %s69
      %s72 = sphi 0, %s71
      %s86 = sphi 0, %s72
      %s90 = sphi 0, %s90
      %s92 = sphi 0, %s90
      %s93 = sphi 0, %s92
      %s107 = sphi 0, %s93
      %s111 = sphi 0, %s111
      %s113 = sphi 0, %s111
      %s114 = sphi 0, %s113
      %s128 = sphi 0, %s114
      %s134 = sphi 0, %s136
      %s137 = sphi 0, %s134
      %s138 = sphi 0, %s137
      %s154 = sphi 0, %s138
    $region4: #{tpu_custom_call.1} parent=1 // loop_header_branch
      %17 = sbr.rel (%p15) target = $region8
    $region5: #{tpu_custom_call.1} parent=1 // loop_body
      %s19 = ssub.s32 %s14, 1
      %s20 = ssub.s32 %s14, 2
      %s21 = sadd.s32 %s14, 1
      %s22 = ssub.s32 %s14, %s21
      %p23 = scmp.eq.s32.totalorder %s22, 0
      %s25 = sadd.s32 %s24, 1
      %s26 = scalar_select %p23, %s24, %s25
      %p29 = pneg %p23
      %p30 = scmp.eq.s32.totalorder %s14, 1
      %p31 = por %p29, %p30
      %p32 = scmp.ne.s32.totalorder %s24, %s27
      %p33 = scmp.eq.s32.totalorder %s14, 0
      %p34 = por %p32, %p33
      %p35 = scmp.ne.s32.totalorder %s24, %s27
      %p36 = scmp.eq.s32.totalorder %s19, 1
      %p37 = por %p35, %p36
      %p38 = scmp.ne.s32.totalorder %s27, %s28
      %p39 = scmp.eq.s32.totalorder %s19, 0
      %p40 = por %p38, %p39
      %p41 = scmp.ne.s32.totalorder %s27, %s28
      %p42 = scmp.eq.s32.totalorder %s20, 1
      %p43 = por %p41, %p42
      %p45 = scmp.ne.s32.totalorder %s28, %s44
      %p46 = scmp.eq.s32.totalorder %s20, 0
      %p47 = por %p45, %p46
      %s49 = sadd.s32 %s48, 1
      %p52 = scmp.eq.s32.totalorder %s14, 1
      %p53 = scmp.ne.s32.totalorder %s48, %s50
      %p54 = scmp.eq.s32.totalorder %s14, 0
      %p55 = por %p53, %p54
      %p56 = scmp.ne.s32.totalorder %s48, %s50
      %p57 = scmp.eq.s32.totalorder %s19, 1
      %p58 = por %p56, %p57
      %p59 = scmp.ne.s32.totalorder %s50, %s51
      %p60 = scmp.eq.s32.totalorder %s19, 0
      %p61 = por %p59, %p60
      %p62 = scmp.ne.s32.totalorder %s50, %s51
      %p63 = scmp.eq.s32.totalorder %s20, 1
      %p64 = por %p62, %p63
      %p66 = scmp.ne.s32.totalorder %s51, %s65
      %p67 = scmp.eq.s32.totalorder %s20, 0
      %p68 = por %p66, %p67
      %s70 = sadd.s32 %s69, 1
      %p73 = scmp.eq.s32.totalorder %s14, 1
      %p74 = scmp.ne.s32.totalorder %s69, %s71
      %p75 = scmp.eq.s32.totalorder %s14, 0
      %p76 = por %p74, %p75
      %p77 = scmp.ne.s32.totalorder %s69, %s71
      %p78 = scmp.eq.s32.totalorder %s19, 1
      %p79 = por %p77, %p78
      %p80 = scmp.ne.s32.totalorder %s71, %s72
      %p81 = scmp.eq.s32.totalorder %s19, 0
      %p82 = por %p80, %p81
      %p83 = scmp.ne.s32.totalorder %s71, %s72
      %p84 = scmp.eq.s32.totalorder %s20, 1
      %p85 = por %p83, %p84
      %p87 = scmp.ne.s32.totalorder %s72, %s86
      %p88 = scmp.eq.s32.totalorder %s20, 0
      %p89 = por %p87, %p88
      %s91 = sadd.s32 %s90, 1
      %p94 = scmp.eq.s32.totalorder %s14, 1
      %p95 = scmp.ne.s32.totalorder %s90, %s92
      %p96 = scmp.eq.s32.totalorder %s14, 0
      %p97 = por %p95, %p96
      %p98 = scmp.ne.s32.totalorder %s90, %s92
      %p99 = scmp.eq.s32.totalorder %s19, 1
      %p100 = por %p98, %p99
      %p101 = scmp.ne.s32.totalorder %s92, %s93
      %p102 = scmp.eq.s32.totalorder %s19, 0
      %p103 = por %p101, %p102
      %p104 = scmp.ne.s32.totalorder %s92, %s93
      %p105 = scmp.eq.s32.totalorder %s20, 1
      %p106 = por %p104, %p105
      %p108 = scmp.ne.s32.totalorder %s93, %s107
      %p109 = scmp.eq.s32.totalorder %s20, 0
      %p110 = por %p108, %p109
      %s112 = sadd.s32 %s111, 1
      %p115 = scmp.eq.s32.totalorder %s14, 1
      %p116 = scmp.ne.s32.totalorder %s111, %s113
      %p117 = scmp.eq.s32.totalorder %s14, 0
      %p118 = por %p116, %p117
      %p119 = scmp.ne.s32.totalorder %s111, %s113
      %p120 = scmp.eq.s32.totalorder %s19, 1
      %p121 = por %p119, %p120
      %p122 = scmp.ne.s32.totalorder %s113, %s114
      %p123 = scmp.eq.s32.totalorder %s19, 0
      %p124 = por %p122, %p123
      %p125 = scmp.ne.s32.totalorder %s113, %s114
      %p126 = scmp.eq.s32.totalorder %s20, 1
      %p127 = por %p125, %p126
      %p129 = scmp.ne.s32.totalorder %s114, %s128
      %p130 = scmp.eq.s32.totalorder %s20, 0
      %p131 = por %p129, %p130
      %s132 = ssub.s32 %s14, %s21
      %p133 = scmp.eq.s32.totalorder %s132, 0
      %s135 = sadd.s32 %s134, 1
      %s136 = scalar_select %p133, %s134, %s135
      %p139 = pneg %p133
      %p140 = scmp.eq.s32.totalorder %s14, 1
      %p141 = por %p139, %p140
      %p142 = scmp.ne.s32.totalorder %s134, %s137
      %p143 = scmp.eq.s32.totalorder %s14, 0
      %p144 = por %p142, %p143
      %p145 = scmp.ne.s32.totalorder %s134, %s137
      %p146 = scmp.eq.s32.totalorder %s19, 1
      %p147 = por %p145, %p146
      %p148 = scmp.ne.s32.totalorder %s137, %s138
      %p149 = scmp.eq.s32.totalorder %s19, 0
      %p150 = por %p148, %p149
      %p151 = scmp.ne.s32.totalorder %s137, %s138
      %p152 = scmp.eq.s32.totalorder %s20, 1
      %p153 = por %p151, %p152
      %p155 = scmp.ne.s32.totalorder %s138, %s154
      %p156 = scmp.eq.s32.totalorder %s20, 0
      %p157 = por %p155, %p156
      %p158 = scmp.le.s32.totalorder 1, %s14
      %p159 = scmp.lt.s32.totalorder %s14, 3
      %p160 = pnand %p158, %p159
      %p161 = pneg %p160
      // Predicated region
      $region9: #{tpu_custom_call.1} parent=5 // pred_check
        _
      $region10: #{tpu_custom_call.1} parent=5 // pred_check_branch
        %163 = sbr.rel (%p160) target = $region12
      $region11: #{tpu_custom_call.1} parent=5 // pred_region
        %s164 = ssub.s32 %s14, 1
        // Predicated region
        $region13: #{tpu_custom_call.1} parent=11 // pred_check
          %p165 = pneg %p61
        $region14: #{tpu_custom_call.1} parent=11 // pred_check_branch
          %167 = sbr.rel (%p165) target = $region16
        $region15: #{tpu_custom_call.1} parent=11 // pred_region
          _
        $region16: #{tpu_custom_call.1} parent=11 // pred_fallthru
          _
        // Predicated region
        $region17: #{tpu_custom_call.1} parent=11 // pred_check
          %p168 = pneg %p82
        $region18: #{tpu_custom_call.1} parent=11 // pred_check_branch
          %170 = sbr.rel (%p168) target = $region20
        $region19: #{tpu_custom_call.1} parent=11 // pred_region
          _
        $region20: #{tpu_custom_call.1} parent=11 // pred_fallthru
          _
        // Predicated region
        $region21: #{tpu_custom_call.1} parent=11 // pred_check
          %p171 = pneg %p103
        $region22: #{tpu_custom_call.1} parent=11 // pred_check_branch
          %173 = sbr.rel (%p171) target = $region24
        $region23: #{tpu_custom_call.1} parent=11 // pred_region
          _
        $region24: #{tpu_custom_call.1} parent=11 // pred_fallthru
          _
        // Predicated region
        $region25: #{tpu_custom_call.1} parent=11 // pred_check
          %p174 = pneg %p124
        $region26: #{tpu_custom_call.1} parent=11 // pred_check_branch
          %176 = sbr.rel (%p174) target = $region28
        $region27: #{tpu_custom_call.1} parent=11 // pred_region
          _
        $region28: #{tpu_custom_call.1} parent=11 // pred_fallthru
          _
      $region12: #{tpu_custom_call.1} parent=5 // pred_fallthru
        _
      %p177 = scmp.lt.s32.totalorder %s14, 2
      // Predicated region
      $region29: #{tpu_custom_call.1} parent=5 // pred_check
        %p178 = pneg %p177
      $region30: #{tpu_custom_call.1} parent=5 // pred_check_branch
        %180 = sbr.rel (%p178) target = $region32
      $region31: #{tpu_custom_call.1} parent=5 // pred_region
        // Predicated region
        $region33: #{tpu_custom_call.1} parent=31 // pred_check
          %p181 = pneg %p34
        $region34: #{tpu_custom_call.1} parent=31 // pred_check_branch
          %183 = sbr.rel (%p181) target = $region36
        $region35: #{tpu_custom_call.1} parent=31 // pred_region
          %p184 = scmp.lt.s32.totalorder %s14, 1
          %s185 = scalar_select %p184, %s14, 1
          %s186 = smul.addr %s185, 8
          %s187 = scalar_lea.vmem %s0, %s186
        $region36: #{tpu_custom_call.1} parent=31 // pred_fallthru
          _
      $region32: #{tpu_custom_call.1} parent=5 // pred_fallthru
        _
      %p188 = scmp.le.s32.totalorder 1, %s14
      %p189 = scmp.lt.s32.totalorder %s14, 3
      %p190 = pnand %p188, %p189
      %p191 = pneg %p190
      // Predicated region
      $region37: #{tpu_custom_call.1} parent=5 // pred_check
        _
      $region38: #{tpu_custom_call.1} parent=5 // pred_check_branch
        %193 = sbr.rel (%p190) target = $region40
      $region39: #{tpu_custom_call.1} parent=5 // pred_region
        %s194 = ssub.s32 %s14, 1
        %p195 = scmp.lt.s32.totalorder %s19, 1
        %s196 = scalar_select %p195, %s19, 1
        %s197 = smul.addr %s196, 8
        %s198 = scalar_lea.vmem %s0, %s197
        %p199 = pneg %p40
        %p200 = pneg %p37
        %p201 = pneg %p61
        %p202 = pneg %p58
        %p203 = pneg %p82
        %p204 = pneg %p79
        %p205 = pneg %p103
        %p206 = pneg %p100
        %p207 = pneg %p124
        %p208 = pneg %p121
        %p209 = pneg %p150
        %p210 = pneg %p147
        %s211 = sand.u32 %s137, 1
        %s212 = scalar_lea.sflag [#allocation3], %s211
        %s213 = sand.u32 %s137, 1
        %s214 = smul.addr %s213, 8
        %s215 = scalar_lea.vmem [#allocation2], %s214
        %p216 = scmp.lt.s32.totalorder %s19, 1
        %s217 = scalar_select %p216, %s19, 1
        %s218 = smul.addr %s217, 8
        %s219 = scalar_lea.vmem %s0, %s218
        %v220 = vld [vmem:[%s219] sm:$0xff]
        %vm221 = vcmask 261120
        %v222 = vsel %vm221, %v220, 0.0
        %223 = vadd.xlane.f32.xlu0 %v222
        %v224 = vpop.xlane.xlu0 %223
        %v225 = vrcp.pop 32.0
        %v226 = vmul.f32 32.0, %v225
        %v227 = vsub.f32 1.0, %v226
        %v228 = vmul.f32 %v225, %v227
        %v229 = vadd.f32 %v225, %v228
        %vm230 = vweird.f32 %v225
        %v231 = vsel %vm230, %v225, %v229
        %v232 = vmul.f32 %v224, %v231
        %v233 = vsub.f32 %v220, %v232
        %v234 = vmul.f32 %v233, %v233
        %v235 = vsel %vm221, %v234, 0.0
        %236 = vadd.xlane.f32.xlu0 %v235
        %v237 = vpop.xlane.xlu0 %236
        %v238 = vmul.f32 %v237, %v231
        %v239 = vadd.f32 %v238, 1e-05
        %v240 = vrsqrt.pop %v239
        %v241 = vmul.f32 %v240, %v239
        %v242 = vmul.f32 %v241, %v240
        %v243 = vmul.f32 0.5, %v242
        %v244 = vsub.f32 1.5, %v243
        %v245 = vmul.f32 %v240, %v244
        %vm246 = vweird.f32 %v239
        %vm247 = vweird.f32 %v240
        %vm248 = vmor %vm246, %vm247
        %v249 = vsel %vm248, %v240, %v245
        %v250 = vmul.f32 %v233, %v249
        %v252 = vsel %vm221, %v250, 0
        %254 = vmatpush.xpose.msra.mxu0 0.0
        %255 = vmatpush.xpose.msra.mxu0 0.0
        %256 = vmatpush.xpose.msra.mxu0 0.0
        %257 = vmatpush.xpose.msra.mxu0 0.0
        %258 = vmatpush.xpose.msra.mxu0 0.0
        %259 = vmatpush.xpose.msra.mxu0 0.0
        %260 = vmatpush.xpose.msra.mxu0 0.0
        %261 = vmatpush.xpose.msra.mxu0 0.0
        %262 = vmatpush.xpose.msra.mxu0 0.0
        %263 = vmatpush.xpose.msra.mxu0 0.0
        %264 = vmatpush.xpose.msra.mxu0 0.0
        %265 = vmatpush.xpose.msra.mxu0 0.0
        %266 = vmatpush.xpose.msra.mxu0 0.0
        %267 = vmatpush.xpose.msra.mxu0 0.0
        %268 = vmatpush.xpose.msra.mxu0 0.0
        %269 = vmatpush.xpose.msra.mxu0 %v252
        %270 = vmatmul.f32.gmra.mxu0 %v252
        %v271 = vpop.f32.mrf.mxu0
        %v272 = vadd.f32 0.0, %v271
        %273 = vdwg.mxu0
        %v274 = vmul.f32 %v272, 0.17677669
        %vm275 = vcmask 64512
        %v276 = vsel %vm275, %v274, -inf
        %277 = vmax.xlane.f32.xlu0 %v276
        %v278 = vpop.xlane.xlu0 %277
        %v279 = vsub.f32 %v274, %v278
        %v280 = vmul.f32 %v279, 1.442695
        %v281 = vpow.pop %v280
        %v282 = vsel %vm275, %v281, 0.0
        %283 = vadd.xlane.f32.xlu0 %v282
        %v284 = vpop.xlane.xlu0 %283
        %v285 = vrcp.pop %v284
        %v286 = vmul.f32 %v284, %v285
        %v287 = vsub.f32 2.0, %v286
        %v288 = vmul.f32 %v285, %v287
        %v289 = vmul.f32 %v281, %v288
        %v291 = vsel %vm275, %v289, 0
        %293 = vmatpush.msra.mxu0 0.0
        %294 = vmatpush.msra.mxu0 0.0
        %295 = vmatpush.msra.mxu0 0.0
        %296 = vmatpush.msra.mxu0 0.0
        %297 = vmatpush.msra.mxu0 0.0
        %298 = vmatpush.msra.mxu0 0.0
        %299 = vmatpush.msra.mxu0 0.0
        %300 = vmatpush.msra.mxu0 0.0
        %301 = vmatpush.msra.mxu0 0.0
        %302 = vmatpush.msra.mxu0 0.0
        %303 = vmatpush.msra.mxu0 0.0
        %304 = vmatpush.msra.mxu0 0.0
        %305 = vmatpush.msra.mxu0 0.0
        %306 = vmatpush.msra.mxu0 0.0
        %307 = vmatpush.msra.mxu0 0.0
        %308 = vmatpush.msra.mxu0 %v250
        %309 = vmatmul.f32.gmra.mxu0 %v291
        %v310 = vpop.f32.mrf.mxu0
        %v311 = vadd.f32 0.0, %v310
        %312 = vdwg.mxu0
        %v313 = vadd.f32 %v220, %v311
        %v314 = vsel %vm221, %v313, 0.0
        %315 = vadd.xlane.f32.xlu0 %v314
        %v316 = vpop.xlane.xlu0 %315
        %v317 = vmul.f32 %v316, %v231
        %v318 = vsub.f32 %v313, %v317
        %v319 = vmul.f32 %v318, %v318
        %v320 = vsel %vm221, %v319, 0.0
        %321 = vadd.xlane.f32.xlu0 %v320
        %v322 = vpop.xlane.xlu0 %321
        %v323 = vmul.f32 %v322, %v231
        %v324 = vadd.f32 %v323, 1e-05
        %v325 = vrsqrt.pop %v324
        %v326 = vmul.f32 %v325, %v324
        %v327 = vmul.f32 %v326, %v325
        %v328 = vmul.f32 0.5, %v327
        %v329 = vsub.f32 1.5, %v328
        %v330 = vmul.f32 %v325, %v329
        %vm331 = vweird.f32 %v324
        %vm332 = vweird.f32 %v325
        %vm333 = vmor %vm331, %vm332
        %v334 = vsel %vm333, %v325, %v330
        %v335 = vmul.f32 %v318, %v334
        %v336 = vld [vmem:[%s1] sm:$0xff]
        %v337 = vld [vmem:[%s1 + $0x8] sm:$0xff]
        %v338 = vld [vmem:[%s1 + $0x10] sm:$0xff]
        %v339 = vld [vmem:[%s1 + $0x18] sm:$0xff]
        %v340 = vld [vmem:[%s2] sm:$0x1]
        %v342 = vperm.slane %v340, 0
        %v345 = vsel %vm221, %v335, 0
        %347 = vmatpush.msra.mxu0 0.0
        %348 = vmatpush.msra.mxu0 0.0
        %349 = vmatpush.msra.mxu0 0.0
        %350 = vmatpush.msra.mxu0 0.0
        %351 = vmatpush.msra.mxu0 0.0
        %352 = vmatpush.msra.mxu0 0.0
        %353 = vmatpush.msra.mxu0 0.0
        %354 = vmatpush.msra.mxu0 0.0
        %355 = vmatpush.msra.mxu0 0.0
        %356 = vmatpush.msra.mxu0 0.0
        %357 = vmatpush.msra.mxu0 0.0
        %358 = vmatpush.msra.mxu0 0.0
        %359 = vmatpush.msra.mxu0 %v339
        %360 = vmatpush.msra.mxu0 %v338
        %361 = vmatpush.msra.mxu0 %v337
        %362 = vmatpush.msra.mxu0 %v336
        %363 = vmatmul.f32.gmra.mxu0 %v345
        %v364 = vpop.f32.mrf.mxu0
        %v365 = vadd.f32 %v342, %v364
        %366 = vdwg.mxu0
        %v367 = vmax.f32 %v365, 0.0
        %v368 = vld [vmem:[%s3] sm:$0xff]
        %v369 = vld [vmem:[%s3 + $0x8] sm:$0xff]
        %v370 = vld [vmem:[%s3 + $0x10] sm:$0xff]
        %v371 = vld [vmem:[%s3 + $0x18] sm:$0xff]
        %v372 = vld [vmem:[%s3 + $0x20] sm:$0xff]
        %v373 = vld [vmem:[%s3 + $0x28] sm:$0xff]
        %v374 = vld [vmem:[%s3 + $0x30] sm:$0xff]
        %v375 = vld [vmem:[%s3 + $0x38] sm:$0xff]
        %v376 = vld [vmem:[%s4] sm:$0x1]
        %v378 = vperm.slane %v376, 0
        %vm380 = vcmask 523264
        %v382 = vsel %vm380, %v367, 0
        %384 = vmatpush.msra.mxu0 0.0
        %385 = vmatpush.msra.mxu0 0.0
        %386 = vmatpush.msra.mxu0 0.0
        %387 = vmatpush.msra.mxu0 0.0
        %388 = vmatpush.msra.mxu0 0.0
        %389 = vmatpush.msra.mxu0 0.0
        %390 = vmatpush.msra.mxu0 0.0
        %391 = vmatpush.msra.mxu0 0.0
        %392 = vmatpush.msra.mxu0 %v375
        %393 = vmatpush.msra.mxu0 %v374
        %394 = vmatpush.msra.mxu0 %v373
        %395 = vmatpush.msra.mxu0 %v372
        %396 = vmatpush.msra.mxu0 %v371
        %397 = vmatpush.msra.mxu0 %v370
        %398 = vmatpush.msra.mxu0 %v369
        %399 = vmatpush.msra.mxu0 %v368
        %400 = vmatmul.f32.gmra.mxu0 %v382
        %v401 = vpop.f32.mrf.mxu0
        %v402 = vadd.f32 %v378, %v401
        %403 = vdwg.mxu0
        %v404 = vadd.f32 %v313, %v402
        %405 = vst.msk [vmem:[%s215] sm:$0xff] %vm221, %v404
        %s406 = sand.u32 %s137, 1
        %s407 = scalar_lea.sflag [#allocation3], %s406
        %s408 = sand.u32 %s137, 1
        %s409 = smul.addr %s408, 8
        %s410 = scalar_lea.vmem [#allocation2], %s409
        // Predicated region
        $region41: #{tpu_custom_call.1} parent=39 // pred_check
          %p411 = pneg %p147
        $region42: #{tpu_custom_call.1} parent=39 // pred_check_branch
          %413 = sbr.rel (%p411) target = $region44
        $region43: #{tpu_custom_call.1} parent=39 // pred_region
          %415 = vsyncadd %s407, 0
          %s416 = smul.addr %s19, 8
          %s417 = scalar_lea.hbm %s5, %s416
          %s419 = sshll.u32 %s410, 4
          %s420 = int_to_ptr.vmem [resolvable:$true] %s419
          %s421 = sshll.u32 %s417, 4
          %s422 = int_to_ptr.hbm [resolvable:$true] %s421
          %424 = dma.vmem_to_hbm [thread:$0]  %s420, 128, %s422, %s407
        $region44: #{tpu_custom_call.1} parent=39 // pred_fallthru
          _
      $region40: #{tpu_custom_call.1} parent=5 // pred_fallthru
        _
      %p425 = scmp.le.s32.totalorder 2, %s14
      // Predicated region
      $region45: #{tpu_custom_call.1} parent=5 // pred_check
        %p426 = pneg %p425
      $region46: #{tpu_custom_call.1} parent=5 // pred_check_branch
        %428 = sbr.rel (%p426) target = $region48
      $region47: #{tpu_custom_call.1} parent=5 // pred_region
        %s429 = ssub.s32 %s14, 2
        // Predicated region
        $region49: #{tpu_custom_call.1} parent=47 // pred_check
          %p430 = pneg %p153
        $region50: #{tpu_custom_call.1} parent=47 // pred_check_branch
          %432 = sbr.rel (%p430) target = $region52
        $region51: #{tpu_custom_call.1} parent=47 // pred_region
          %s433 = sand.u32 %s138, 1
          %s434 = scalar_lea.sflag [#allocation3], %s433
          %s435 = sand.u32 %s138, 1
          %s436 = smul.addr %s435, 8
          %s437 = scalar_lea.vmem [#allocation2], %s436
          %439 = dma.done %s434, 128
        $region52: #{tpu_custom_call.1} parent=47 // pred_fallthru
          _
      $region48: #{tpu_custom_call.1} parent=5 // pred_fallthru
        _
    $region6: #{tpu_custom_call.1} parent=1 // loop_footer
      %s18 = sadd.s32 1, %s14
    $region7: #{tpu_custom_call.1} parent=1 // loop_footer_branch
      %13 = sbr.rel target = $region3
    $region8: #{tpu_custom_call.1} parent=1 // loop_exit
      _
    %440 = vsyncpa [#allocation3], 1
    %s441 = scalar_lea.sflag [#allocation3], 1
    %442 = vsyncpa %s441, 1

</llo_original>
